<compile_context>
chip_gen: v6e
topology: v6e:2x2x1
jax: 0.10.0
libtpu: 0.0.40
codegen_flags: <defaults>
</compile_context>

<pallas_src>
import jax
import jax.numpy as jnp
from jax import lax
from jax.experimental import pallas as pl
from jax.experimental.pallas import tpu as pltpu


def _round_up(x, m):
    return (x + m - 1) // m * m


def ffn_kernel(x_ref, w1_ref, b1_ref, w2_ref, b2_ref, o_ref, acc_ref):
    # x_ref:   (tm, d_model)
    # w1_ref:  (tk_ff, d_model)     b1_ref: (1, tk_ff)
    # w2_ref:  (d_model, tk_ff)     b2_ref: (1, d_model)
    # o_ref:   (tm, d_model)        acc_ref: (tm, d_model) f32 scratch
    k = pl.program_id(1)

    @pl.when(k == 0)
    def _init():
        acc_ref[...] = jnp.zeros_like(acc_ref)

    # fc1 slice: x @ W1_tile.T  -> (tm, tk_ff), contraction matches nn.Linear
    # layout directly (no wrapper-side transpose materialized).
    h = lax.dot_general(
        x_ref[...], w1_ref[...],
        dimension_numbers=(((1,), (1,)), ((), ())),
        preferred_element_type=jnp.float32,
    )
    h = jnp.maximum(h + b1_ref[...], 0.0)          # ReLU, (tm, tk_ff)

    # fc2 slice: h @ W2_tile.T -> (tm, d_model), accumulate over d_ff tiles.
    acc_ref[...] += lax.dot_general(
        h.astype(w2_ref.dtype), w2_ref[...],
        dimension_numbers=(((1,), (1,)), ((), ())),
        preferred_element_type=jnp.float32,
    )

    @pl.when(k == pl.num_programs(1) - 1)
    def _finalize():
        o_ref[...] = (acc_ref[...] + b2_ref[...]).astype(o_ref.dtype)


def position_wise_feed_forward(x, w1, b1, w2, b2, *, tm=512, tk_ff=512):
    """x: (batch, seq, d_model); w1: (d_ff, d_model); b1: (d_ff,);
    w2: (d_model, d_ff); b2: (d_model,).  Returns (batch, seq, d_model)."""
    batch, seq, d_model = x.shape
    d_ff = w1.shape[0]
    assert w1.shape == (d_ff, d_model)
    assert w2.shape == (d_model, d_ff)

    M = batch * seq

    # Row tile: large (MXU / overhead friendly), but never larger than the
    # 8-rounded problem so tiny inputs stay tiny.  Ragged M handled by padding.
    tm = max(8, min(tm, _round_up(M, 8)))
    M_pad = _round_up(M, tm)

    # Reduction tile must divide d_ff exactly so no padded partial block ever
    # feeds garbage into the accumulator.
    tk_ff = min(tk_ff, d_ff)
    if d_ff % tk_ff != 0:
        tk_ff = d_ff  # fall back to an un-tiled reduction

    x2 = x.reshape(M, d_model)
    if M_pad != M:
        x2 = jnp.pad(x2, ((0, M_pad - M), (0, 0)))

    b1r = b1.reshape(1, d_ff)
    b2r = b2.reshape(1, d_model)

    grid = (M_pad // tm, d_ff // tk_ff)

    itemsize = jnp.dtype(x.dtype).itemsize
    cost = pl.CostEstimate(
        flops=4 * M_pad * d_model * d_ff,            # two M x d_ff x d_model matmuls
        transcendentals=0,
        bytes_accessed=itemsize * (
            2 * M_pad * d_model                      # x in, y out
            + 2 * d_model * d_ff                     # w1, w2
            + d_ff + d_model                         # biases
        ),
    )

    out = pl.pallas_call(
        ffn_kernel,
        out_shape=jax.ShapeDtypeStruct((M_pad, d_model), x.dtype),
        grid=grid,
        in_specs=[
            pl.BlockSpec((tm, d_model), lambda i, k: (i, 0)),       # x rows
            pl.BlockSpec((tk_ff, d_model), lambda i, k: (k, 0)),    # fc1 weight slice
            pl.BlockSpec((1, tk_ff), lambda i, k: (0, k)),          # fc1 bias slice
            pl.BlockSpec((d_model, tk_ff), lambda i, k: (0, k)),    # fc2 weight slice
            pl.BlockSpec((1, d_model), lambda i, k: (0, 0)),        # fc2 bias
        ],
        out_specs=pl.BlockSpec((tm, d_model), lambda i, k: (i, 0)),
        scratch_shapes=[pltpu.VMEM((tm, d_model), jnp.float32)],
        compiler_params=pltpu.CompilerParams(
            dimension_semantics=("parallel", "arbitrary")),
        cost_estimate=cost,
    )(x2, w1, b1r, w2, b2r)

    return out[:M].reshape(batch, seq, d_model)


if __name__ == "__main__":
    # Small correctness smoke test (production tuning should use real
    # d_model / d_ff=1024-scale shapes; lane widths below 128 are masked).
    batch, seq, d_model, d_ff = 2, 8, 32, 64

    key = jax.random.PRNGKey(0)
    kx, kw1, kb1, kw2, kb2 = jax.random.split(key, 5)

    x = jax.random.normal(kx, (batch, seq, d_model), dtype=jnp.float32)
    # nn.Linear weight shapes: fc1.weight (d_ff, d_model), fc2.weight (d_model, d_ff)
    w1 = jax.random.normal(kw1, (d_ff, d_model), dtype=jnp.float32) * 0.05
    b1 = jax.random.normal(kb1, (d_ff,), dtype=jnp.float32) * 0.05
    w2 = jax.random.normal(kw2, (d_model, d_ff), dtype=jnp.float32) * 0.05
    b2 = jax.random.normal(kb2, (d_model,), dtype=jnp.float32) * 0.05

    y = position_wise_feed_forward(x, w1, b1, w2, b2)
    y = jax.block_until_ready(y)

    # Pure-JAX reference (same math as the PyTorch forward, f32).
    ref = jnp.maximum(x @ w1.T + b1, 0.0) @ w2.T + b2
    assert y.shape == (batch, seq, d_model)
    assert jnp.allclose(y, ref, atol=1e-5, rtol=1e-5)

    print("KERNEL_OK")
</pallas_src>

<mosaic_0001>
module attributes {stable_mosaic.version = 11 : i64} {
  func.func @ffn_kernel(%arg0: i32, %arg1: i32, %arg2: memref<16x32xf32, #tpu.memory_space<vmem>>, %arg3: memref<64x32xf32, #tpu.memory_space<vmem>>, %arg4: memref<1x64xf32, #tpu.memory_space<vmem>>, %arg5: memref<32x64xf32, #tpu.memory_space<vmem>>, %arg6: memref<1x32xf32, #tpu.memory_space<vmem>>, %arg7: memref<16x32xf32, #tpu.memory_space<vmem>>, %arg8: memref<16x32xf32, #tpu.memory_space<vmem>>) attributes {dimension_semantics = [#tpu.dimension_semantics<parallel>, #tpu.dimension_semantics<arbitrary>], iteration_bounds = array<i64: 1, 1>, scalar_prefetch = 0 : i64, scratch_operands = 1 : i64, tpu.core_type = #tpu.core_type<tc>, window_params = [{transform_indices = @transform_0, window_bounds = array<i64: 16, 32>}, {transform_indices = @transform_1, window_bounds = array<i64: 64, 32>}, {transform_indices = @transform_2, window_bounds = array<i64: 1, 64>}, {transform_indices = @transform_3, window_bounds = array<i64: 32, 64>}, {pipeline_mode = #tpu.pipeline_mode<synchronous>, transform_indices = @transform_4, window_bounds = array<i64: 1, 32>}, {transform_indices = @transform_5, window_bounds = array<i64: 16, 32>}]} {
    %c0_i32 = arith.constant 0 : i32
    %0 = arith.cmpi eq, %arg1, %c0_i32 : i32
    %1 = arith.extui %0 : i1 to i32
    %c0_i32_0 = arith.constant 0 : i32
    %2 = arith.cmpi ne, %1, %c0_i32_0 : i32
    scf.if %2 {
      %cst_16 = arith.constant 0.000000e+00 : f32
      %19 = vector.broadcast %cst_16 : f32 to vector<16x32xf32>
      %c0_17 = arith.constant 0 : index
      %c0_18 = arith.constant 0 : index
      %20 = vector.load %arg8[%c0_17, %c0_18] : memref<16x32xf32, #tpu.memory_space<vmem>>, vector<16x32xf32>
      tpu.vector_store %arg8[%c0_17, %c0_18], %19 {strides = array<i32>} : memref<16x32xf32, #tpu.memory_space<vmem>>, vector<16x32xf32>,
    } else {
    }
    %c0 = arith.constant 0 : index
    %c0_1 = arith.constant 0 : index
    %3 = vector.load %arg2[%c0, %c0_1] : memref<16x32xf32, #tpu.memory_space<vmem>>, vector<16x32xf32>
    %c0_2 = arith.constant 0 : index
    %c0_3 = arith.constant 0 : index
    %4 = vector.load %arg3[%c0_2, %c0_3] : memref<64x32xf32, #tpu.memory_space<vmem>>, vector<64x32xf32>
    %cst = arith.constant dense<0.000000e+00> : vector<16x64xf32>
    %5 = tpu.matmul %3, %4, %cst {dimension_numbers = #tpu.dot_dimension_numbers<[1], [1], [0], [0], [0, 0, 1, 0], [], []>} : vector<16x32xf32>, vector<64x32xf32>, vector<16x64xf32> -> vector<16x64xf32>
    %c0_4 = arith.constant 0 : index
    %c0_5 = arith.constant 0 : index
    %6 = vector.load %arg4[%c0_4, %c0_5] : memref<1x64xf32, #tpu.memory_space<vmem>>, vector<1x64xf32>
    %7 = vector.broadcast %6 : vector<1x64xf32> to vector<16x64xf32>
    %8 = arith.addf %5, %7 : vector<16x64xf32>
    %cst_6 = arith.constant 0.000000e+00 : f32
    %9 = vector.broadcast %cst_6 : f32 to vector<16x64xf32>
    %10 = arith.maximumf %8, %9 : vector<16x64xf32>
    %c0_7 = arith.constant 0 : index
    %c0_8 = arith.constant 0 : index
    %11 = vector.load %arg8[%c0_7, %c0_8] : memref<16x32xf32, #tpu.memory_space<vmem>>, vector<16x32xf32>
    %c0_9 = arith.constant 0 : index
    %c0_10 = arith.constant 0 : index
    %12 = vector.load %arg5[%c0_9, %c0_10] : memref<32x64xf32, #tpu.memory_space<vmem>>, vector<32x64xf32>
    %cst_11 = arith.constant dense<0.000000e+00> : vector<16x32xf32>
    %13 = tpu.matmul %10, %12, %cst_11 {dimension_numbers = #tpu.dot_dimension_numbers<[1], [1], [0], [0], [0, 0, 1, 0], [], []>} : vector<16x64xf32>, vector<32x64xf32>, vector<16x32xf32> -> vector<16x32xf32>
    %14 = arith.addf %11, %13 : vector<16x32xf32>
    %c0_12 = arith.constant 0 : index
    %c0_13 = arith.constant 0 : index
    %15 = vector.load %arg8[%c0_12, %c0_13] : memref<16x32xf32, #tpu.memory_space<vmem>>, vector<16x32xf32>
    tpu.vector_store %arg8[%c0_12, %c0_13], %14 {strides = array<i32>} : memref<16x32xf32, #tpu.memory_space<vmem>>, vector<16x32xf32>,
    %c0_i32_14 = arith.constant 0 : i32
    %16 = arith.cmpi eq, %arg1, %c0_i32_14 : i32
    %17 = arith.extui %16 : i1 to i32
    %c0_i32_15 = arith.constant 0 : i32
    %18 = arith.cmpi ne, %17, %c0_i32_15 : i32
    scf.if %18 {
      %c0_16 = arith.constant 0 : index
      %c0_17 = arith.constant 0 : index
      %19 = vector.load %arg8[%c0_16, %c0_17] : memref<16x32xf32, #tpu.memory_space<vmem>>, vector<16x32xf32>
      %c0_18 = arith.constant 0 : index
      %c0_19 = arith.constant 0 : index
      %20 = vector.load %arg6[%c0_18, %c0_19] : memref<1x32xf32, #tpu.memory_space<vmem>>, vector<1x32xf32>
      %21 = vector.broadcast %20 : vector<1x32xf32> to vector<16x32xf32>
      %22 = arith.addf %19, %21 : vector<16x32xf32>
      %c0_20 = arith.constant 0 : index
      %c0_21 = arith.constant 0 : index
      %23 = vector.load %arg7[%c0_20, %c0_21] : memref<16x32xf32, #tpu.memory_space<vmem>>, vector<16x32xf32>
      tpu.vector_store %arg7[%c0_20, %c0_21], %22 {strides = array<i32>} : memref<16x32xf32, #tpu.memory_space<vmem>>, vector<16x32xf32>,
    } else {
    }
    return
  }
  func.func @transform_0(%arg0: i32, %arg1: i32) -> (i32, i32) {
    %c0_i32 = arith.constant 0 : i32
    %c0_i32_0 = arith.constant 0 : i32
    return %arg0, %c0_i32 : i32, i32
  }
  func.func @transform_1(%arg0: i32, %arg1: i32) -> (i32, i32) {
    %c0_i32 = arith.constant 0 : i32
    %c0_i32_0 = arith.constant 0 : i32
    return %arg1, %c0_i32 : i32, i32
  }
  func.func @transform_2(%arg0: i32, %arg1: i32) -> (i32, i32) {
    %c0_i32 = arith.constant 0 : i32
    %c0_i32_0 = arith.constant 0 : i32
    return %c0_i32, %arg1 : i32, i32
  }
  func.func @transform_3(%arg0: i32, %arg1: i32) -> (i32, i32) {
    %c0_i32 = arith.constant 0 : i32
    %c0_i32_0 = arith.constant 0 : i32
    return %c0_i32, %arg1 : i32, i32
  }
  func.func @transform_4(%arg0: i32, %arg1: i32) -> (i32, i32) {
    %c0_i32 = arith.constant 0 : i32
    %c0_i32_0 = arith.constant 0 : i32
    %c0_i32_1 = arith.constant 0 : i32
    return %c0_i32, %c0_i32_0 : i32, i32
  }
  func.func @transform_5(%arg0: i32, %arg1: i32) -> (i32, i32) {
    %c0_i32 = arith.constant 0 : i32
    %c0_i32_0 = arith.constant 0 : i32
    return %arg0, %c0_i32 : i32, i32
  }
}

</mosaic_0001>

<llo_original>
// kernel: tpu_custom_call.1
$region0: #{tpu_custom_call.1}
  #allocation0 [shape = 'u32[]', space=smem, size = 0x4, offset = 0x4, fixed_abs, tag = 'smem constant byte address 0x4 - core index']
  #allocation1 [shape = 'u32[144,128]{1,0:T(1,128)}', space=vmem, size = 0x12000, scoped, tag = 'internal scratch']
  #allocation2 [shape = 'f32[16,32]{1,0:T(8,128)}', space=vmem, size = 0x2000, scoped, tag = 'scratch operand']
  %s0 = inlined_call_operand.vmem [shape: f32[16,32], index: 0, kind: input, shape index: {}]
  %s1 = inlined_call_operand.vmem [shape: f32[64,32], index: 1, kind: input, shape index: {}]
  %s2 = inlined_call_operand.vmem [shape: f32[1,64], index: 2, kind: input, shape index: {}]
  %s3 = inlined_call_operand.vmem [shape: f32[32,64], index: 3, kind: input, shape index: {}]
  %s4 = inlined_call_operand.vmem [shape: f32[1,32], index: 4, kind: input, shape index: {}]
  %s5 = inlined_call_operand.hbm [shape: f32[16,32], index: 5, kind: output, shape index: {}]
  %s6 = sld [smem:[#allocation0]]
  $region38: #{tpu_custom_call.1} parent=0
    _
  %s8 = ssub.s32 1, %s6
  %s9 = scalar_select 0, %s8, %s6
  $region1: #{tpu_custom_call.1} parent=0
    #allocation3 [shape = 'u8[8192]{0}', space=vmem, size = 0x2000, scoped, tag = 'output window, operand 0, single buffered']
    #allocation4 [shape = 's32[1]{0}', space=sflag, size = 0x4, scoped, tag = 'scoped memory for tpu_custom_call.1']
    %10 = vsyncpa [#allocation4], 0
    // Predicated region
    $region2: #{tpu_custom_call.1} parent=1 // pred_check
      _
    $region3: #{tpu_custom_call.1} parent=1 // pred_check_branch
      %12 = sbr.rel (0) target = $region5
    $region4: #{tpu_custom_call.1} parent=1 // pred_region
      _
    $region5: #{tpu_custom_call.1} parent=1 // pred_fallthru
      _
    // Predicated region
    $region6: #{tpu_custom_call.1} parent=1 // pred_check
      _
    $region7: #{tpu_custom_call.1} parent=1 // pred_check_branch
      %14 = sbr.rel (0) target = $region9
    $region8: #{tpu_custom_call.1} parent=1 // pred_region
      _
    $region9: #{tpu_custom_call.1} parent=1 // pred_fallthru
      _
    // Predicated region
    $region10: #{tpu_custom_call.1} parent=1 // pred_check
      _
    $region11: #{tpu_custom_call.1} parent=1 // pred_check_branch
      %16 = sbr.rel (0) target = $region13
    $region12: #{tpu_custom_call.1} parent=1 // pred_region
      _
    $region13: #{tpu_custom_call.1} parent=1 // pred_fallthru
      _
    // Predicated region
    $region14: #{tpu_custom_call.1} parent=1 // pred_check
      _
    $region15: #{tpu_custom_call.1} parent=1 // pred_check_branch
      %18 = sbr.rel (0) target = $region17
    $region16: #{tpu_custom_call.1} parent=1 // pred_region
      _
    $region17: #{tpu_custom_call.1} parent=1 // pred_fallthru
      _
    // Predicated region
    $region18: #{tpu_custom_call.1} parent=1 // pred_check
      _
    $region19: #{tpu_custom_call.1} parent=1 // pred_check_branch
      %20 = sbr.rel (0) target = $region21
    $region20: #{tpu_custom_call.1} parent=1 // pred_region
      _
    $region21: #{tpu_custom_call.1} parent=1 // pred_fallthru
      _
    %p21 = scmp.eq.s32.totalorder 0, 0
    // Predicated region
    $region22: #{tpu_custom_call.1} parent=1 // pred_check
      %p22 = pneg %p21
    $region23: #{tpu_custom_call.1} parent=1 // pred_check_branch
      %24 = sbr.rel (%p22) target = $region25
    $region24: #{tpu_custom_call.1} parent=1 // pred_region
      %vm25 = vcmask 261120
      %26 = vst.msk [vmem:[#allocation2] sm:$0xff] %vm25, 0.0
      %27 = vst.msk [vmem:[#allocation2 + $0x8] sm:$0xff] %vm25, 0.0
    $region25: #{tpu_custom_call.1} parent=1 // pred_fallthru
      _
    %v28 = vld [vmem:[%s0] sm:$0xff]
    %v29 = vld [vmem:[%s0 + $0x8] sm:$0xff]
    %v30 = vld [vmem:[%s1] sm:$0xff]
    %v31 = vld [vmem:[%s1 + $0x8] sm:$0xff]
    %v32 = vld [vmem:[%s1 + $0x10] sm:$0xff]
    %v33 = vld [vmem:[%s1 + $0x18] sm:$0xff]
    %v34 = vld [vmem:[%s1 + $0x20] sm:$0xff]
    %v35 = vld [vmem:[%s1 + $0x28] sm:$0xff]
    %v36 = vld [vmem:[%s1 + $0x30] sm:$0xff]
    %v37 = vld [vmem:[%s1 + $0x38] sm:$0xff]
    %v38 = vld [vmem:[%s2] sm:$0x1]
    %v40 = vlaneseq
    %v41 = vshrl.u32 %v40, 7
    %v42 = vsub.s32 0, %v41
    %v43 = vrot.slane %v38, %v42
    %vm45 = vcmask 261120
    %v47 = vsel %vm45, %v28, 0
    %v50 = vsel %vm45, %v29, 0
    %v53 = vsel %vm45, %v30, 0
    %v56 = vsel %vm45, %v31, 0
    %v59 = vsel %vm45, %v32, 0
    %v62 = vsel %vm45, %v33, 0
    %v65 = vsel %vm45, %v34, 0
    %v68 = vsel %vm45, %v35, 0
    %v71 = vsel %vm45, %v36, 0
    %v74 = vsel %vm45, %v37, 0
    %76 = vmatprep.subr.mxu0 0.0
    %77 = vmatpush1.xpose.msra.mxu0 0.0
    %78 = vmatprep.subr.mxu0 0.0
    %79 = vmatpush1.xpose.msra.mxu0 0.0
    %80 = vmatprep.subr.mxu0 0.0
    %81 = vmatpush1.xpose.msra.mxu0 0.0
    %82 = vmatprep.subr.mxu0 0.0
    %83 = vmatpush1.xpose.msra.mxu0 0.0
    %84 = vmatprep.subr.mxu0 0.0
    %85 = vmatpush1.xpose.msra.mxu0 0.0
    %86 = vmatprep.subr.mxu0 0.0
    %87 = vmatpush1.xpose.msra.mxu0 0.0
    %88 = vmatprep.subr.mxu0 0.0
    %89 = vmatpush1.xpose.msra.mxu0 0.0
    %90 = vmatprep.subr.mxu0 0.0
    %91 = vmatpush1.xpose.msra.mxu0 0.0
    %92 = vmatprep.subr.mxu0 0.0
    %93 = vmatpush1.xpose.msra.mxu0 %v74
    %94 = vmatprep.subr.mxu0 0.0
    %95 = vmatpush1.xpose.msra.mxu0 %v71
    %96 = vmatprep.subr.mxu0 0.0
    %97 = vmatpush1.xpose.msra.mxu0 %v68
    %98 = vmatprep.subr.mxu0 0.0
    %99 = vmatpush1.xpose.msra.mxu0 %v65
    %100 = vmatprep.subr.mxu0 0.0
    %101 = vmatpush1.xpose.msra.mxu0 %v62
    %102 = vmatprep.subr.mxu0 0.0
    %103 = vmatpush1.xpose.msra.mxu0 %v59
    %104 = vmatprep.subr.mxu0 0.0
    %105 = vmatpush1.xpose.msra.mxu0 %v56
    %106 = vmatprep.subr.mxu0 0.0
    %107 = vmatpush1.xpose.msra.mxu0 %v53
    %108 = vmatprep.subr.mxu0 0.0
    %109 = vmatpush2.xpose.msra.mxu0 0.0
    %110 = vmatprep.subr.mxu0 0.0
    %111 = vmatpush2.xpose.msra.mxu0 0.0
    %112 = vmatprep.subr.mxu0 0.0
    %113 = vmatpush2.xpose.msra.mxu0 0.0
    %114 = vmatprep.subr.mxu0 0.0
    %115 = vmatpush2.xpose.msra.mxu0 0.0
    %116 = vmatprep.subr.mxu0 0.0
    %117 = vmatpush2.xpose.msra.mxu0 0.0
    %118 = vmatprep.subr.mxu0 0.0
    %119 = vmatpush2.xpose.msra.mxu0 0.0
    %120 = vmatprep.subr.mxu0 0.0
    %121 = vmatpush2.xpose.msra.mxu0 0.0
    %122 = vmatprep.subr.mxu0 0.0
    %123 = vmatpush2.xpose.msra.mxu0 0.0
    %124 = vmatprep.subr.mxu0 0.0
    %125 = vmatpush2.xpose.msra.mxu0 0.0
    %126 = vmatprep.subr.mxu0 0.0
    %127 = vmatpush2.xpose.msra.mxu0 0.0
    %128 = vmatprep.subr.mxu0 0.0
    %129 = vmatpush2.xpose.msra.mxu0 0.0
    %130 = vmatprep.subr.mxu0 0.0
    %131 = vmatpush2.xpose.msra.mxu0 0.0
    %132 = vmatprep.subr.mxu0 0.0
    %133 = vmatpush2.xpose.msra.mxu0 0.0
    %134 = vmatprep.subr.mxu0 0.0
    %135 = vmatpush2.xpose.msra.mxu0 0.0
    %136 = vmatprep.subr.mxu0 0.0
    %137 = vmatpush2.xpose.msra.mxu0 0.0
    %138 = vmatprep.subr.mxu0 0.0
    %139 = vmatpush2.xpose.msra.mxu0 0.0
    %140 = vmatprep.mubr.f32.mxu0 0.0
    %141 = vmatmul.mubr.f32.gmra.mxu0 %v47
    %v142 = vpop.f32.mrf.mxu0
    %v143 = vadd.f32 %v43, %v142
    %v144 = vpop.f32.mrf.mxu0
    %145 = vmatprep.mubr.f32.mxu0 0.0
    %146 = vmatmul.mubr.f32.gmra.mxu0 %v50
    %v147 = vpop.f32.mrf.mxu0
    %v148 = vadd.f32 %v43, %v147
    %v149 = vpop.f32.mrf.mxu0
    %150 = vdwg.mxu0
    %v151 = vmax.f32 %v143, 0.0
    %v152 = vmax.f32 %v148, 0.0
    %v153 = vld [vmem:[#allocation2] sm:$0xff]
    %v154 = vld [vmem:[#allocation2 + $0x8] sm:$0xff]
    %v155 = vld [vmem:[%s3] sm:$0xff]
    %v156 = vld [vmem:[%s3 + $0x8] sm:$0xff]
    %v157 = vld [vmem:[%s3 + $0x10] sm:$0xff]
    %v158 = vld [vmem:[%s3 + $0x18] sm:$0xff]
    %vm159 = vcmask 523264
    %v161 = vsel %vm159, %v151, 0
    %v164 = vsel %vm159, %v152, 0
    %v167 = vsel %vm159, %v155, 0
    %v170 = vsel %vm159, %v156, 0
    %v173 = vsel %vm159, %v157, 0
    %v176 = vsel %vm159, %v158, 0
    %178 = vmatprep.subr.mxu0 0.0
    %179 = vmatpush1.xpose.msra.mxu0 0.0
    %180 = vmatprep.subr.mxu0 0.0
    %181 = vmatpush1.xpose.msra.mxu0 0.0
    %182 = vmatprep.subr.mxu0 0.0
    %183 = vmatpush1.xpose.msra.mxu0 0.0
    %184 = vmatprep.subr.mxu0 0.0
    %185 = vmatpush1.xpose.msra.mxu0 0.0
    %186 = vmatprep.subr.mxu0 0.0
    %187 = vmatpush1.xpose.msra.mxu0 0.0
    %188 = vmatprep.subr.mxu0 0.0
    %189 = vmatpush1.xpose.msra.mxu0 0.0
    %190 = vmatprep.subr.mxu0 0.0
    %191 = vmatpush1.xpose.msra.mxu0 0.0
    %192 = vmatprep.subr.mxu0 0.0
    %193 = vmatpush1.xpose.msra.mxu0 0.0
    %194 = vmatprep.subr.mxu0 0.0
    %195 = vmatpush1.xpose.msra.mxu0 0.0
    %196 = vmatprep.subr.mxu0 0.0
    %197 = vmatpush1.xpose.msra.mxu0 0.0
    %198 = vmatprep.subr.mxu0 0.0
    %199 = vmatpush1.xpose.msra.mxu0 0.0
    %200 = vmatprep.subr.mxu0 0.0
    %201 = vmatpush1.xpose.msra.mxu0 0.0
    %202 = vmatprep.subr.mxu0 0.0
    %203 = vmatpush1.xpose.msra.mxu0 %v176
    %204 = vmatprep.subr.mxu0 0.0
    %205 = vmatpush1.xpose.msra.mxu0 %v173
    %206 = vmatprep.subr.mxu0 0.0
    %207 = vmatpush1.xpose.msra.mxu0 %v170
    %208 = vmatprep.subr.mxu0 0.0
    %209 = vmatpush1.xpose.msra.mxu0 %v167
    %210 = vmatprep.subr.mxu0 0.0
    %211 = vmatpush2.xpose.msra.mxu0 0.0
    %212 = vmatprep.subr.mxu0 0.0
    %213 = vmatpush2.xpose.msra.mxu0 0.0
    %214 = vmatprep.subr.mxu0 0.0
    %215 = vmatpush2.xpose.msra.mxu0 0.0
    %216 = vmatprep.subr.mxu0 0.0
    %217 = vmatpush2.xpose.msra.mxu0 0.0
    %218 = vmatprep.subr.mxu0 0.0
    %219 = vmatpush2.xpose.msra.mxu0 0.0
    %220 = vmatprep.subr.mxu0 0.0
    %221 = vmatpush2.xpose.msra.mxu0 0.0
    %222 = vmatprep.subr.mxu0 0.0
    %223 = vmatpush2.xpose.msra.mxu0 0.0
    %224 = vmatprep.subr.mxu0 0.0
    %225 = vmatpush2.xpose.msra.mxu0 0.0
    %226 = vmatprep.subr.mxu0 0.0
    %227 = vmatpush2.xpose.msra.mxu0 0.0
    %228 = vmatprep.subr.mxu0 0.0
    %229 = vmatpush2.xpose.msra.mxu0 0.0
    %230 = vmatprep.subr.mxu0 0.0
    %231 = vmatpush2.xpose.msra.mxu0 0.0
    %232 = vmatprep.subr.mxu0 0.0
    %233 = vmatpush2.xpose.msra.mxu0 0.0
    %234 = vmatprep.subr.mxu0 0.0
    %235 = vmatpush2.xpose.msra.mxu0 0.0
    %236 = vmatprep.subr.mxu0 0.0
    %237 = vmatpush2.xpose.msra.mxu0 0.0
    %238 = vmatprep.subr.mxu0 0.0
    %239 = vmatpush2.xpose.msra.mxu0 0.0
    %240 = vmatprep.subr.mxu0 0.0
    %241 = vmatpush2.xpose.msra.mxu0 0.0
    %242 = vmatprep.mubr.f32.mxu0 0.0
    %243 = vmatmul.mubr.f32.gmra.mxu0 %v161
    %v244 = vpop.f32.mrf.mxu0
    %v245 = vadd.f32 0.0, %v244
    %v246 = vpop.f32.mrf.mxu0
    %247 = vmatprep.mubr.f32.mxu0 0.0
    %248 = vmatmul.mubr.f32.gmra.mxu0 %v164
    %v249 = vpop.f32.mrf.mxu0
    %v250 = vadd.f32 0.0, %v249
    %v251 = vpop.f32.mrf.mxu0
    %252 = vdwg.mxu0
    %v253 = vadd.f32 %v153, %v245
    %v254 = vadd.f32 %v154, %v250
    %255 = vst.msk [vmem:[#allocation2] sm:$0xff] %vm45, %v253
    %256 = vst.msk [vmem:[#allocation2 + $0x8] sm:$0xff] %vm45, %v254
    // Predicated region
    $region26: #{tpu_custom_call.1} parent=1 // pred_check
      %p257 = pneg %p21
    $region27: #{tpu_custom_call.1} parent=1 // pred_check_branch
      %259 = sbr.rel (%p257) target = $region29
    $region28: #{tpu_custom_call.1} parent=1 // pred_region
      %v260 = vld [vmem:[#allocation2] sm:$0xff]
      %v261 = vld [vmem:[#allocation2 + $0x8] sm:$0xff]
      %v262 = vld [vmem:[%s4] sm:$0x1]
      %v264 = vlaneseq
      %v265 = vshrl.u32 %v264, 7
      %v266 = vsub.s32 0, %v265
      %v267 = vrot.slane %v262, %v266
      %v269 = vadd.f32 %v260, %v267
      %v270 = vadd.f32 %v261, %v267
      %271 = vst.msk [vmem:[#allocation3] sm:$0xff] %vm45, %v269
      %272 = vst.msk [vmem:[#allocation3 + $0x8] sm:$0xff] %vm45, %v270
    $region29: #{tpu_custom_call.1} parent=1 // pred_fallthru
      _
    // Predicated region
    $region30: #{tpu_custom_call.1} parent=1 // pred_check
      _
    $region31: #{tpu_custom_call.1} parent=1 // pred_check_branch
      %274 = sbr.rel (0) target = $region33
    $region32: #{tpu_custom_call.1} parent=1 // pred_region
      %s276 = ssub.s32 256, 256
      %277 = vsyncadd [#allocation4], %s276
      %s278 = sshll.u32 [#allocation3], 4
      %s279 = int_to_ptr.vmem [resolvable:$true] %s278
      %284 = dma.vmem_to_hbm [thread:$0]  %s279, 256, %s5, [#allocation4], 128, 128, 8
    $region33: #{tpu_custom_call.1} parent=1 // pred_fallthru
      _
    // Predicated region
    $region34: #{tpu_custom_call.1} parent=1 // pred_check
      _
    $region35: #{tpu_custom_call.1} parent=1 // pred_check_branch
      %286 = sbr.rel (0) target = $region37
    $region36: #{tpu_custom_call.1} parent=1 // pred_region
      %287 = dma.done [#allocation4], 256
    $region37: #{tpu_custom_call.1} parent=1 // pred_fallthru
      _
    %288 = vsyncpa [#allocation4], 1

</llo_original>
